<compile_context>
chip_gen: v6e
topology: v6e:2x2x1
jax: 0.10.0
libtpu: 0.0.40
codegen_flags: <defaults>
</compile_context>

<pallas_src>
import functools

import jax
import jax.numpy as jnp
from jax.experimental import pallas as pl
from jax.experimental.pallas import tpu as pltpu


def _classify_kernel(x_ref, w_ref, b_ref, o_ref, *, inv_hw):
    # x_ref : (TN, TC, HW) bf16  NCHW-native activation block (HW on lanes)
    # w_ref : (TC, TK)     bf16  pre-transposed FC weight tile
    # b_ref : (1, TK)      f32   zero-padded bias tile
    # o_ref : (TN, TK)     f32   lane-dense output tile, resident across c
    c = pl.program_id(2)

    @pl.when(c == 0)
    def _init():
        # The f32 output block doubles as the accumulator across the channel
        # reduction axis; seed it with the bias instead of a finalize add.
        o_ref[...] = jnp.broadcast_to(b_ref[...], o_ref.shape)

    # Spatial sum: lane-axis reduce with f32 accumulation, then the 1/(H*W)
    # scale applied once on the small (TN, TC) tile.
    pooled = jnp.sum(x_ref[...].astype(jnp.float32), axis=-1) * inv_hw
    # Partial FC on the MXU in bf16, accumulated in f32 directly in o_ref.
    o_ref[...] += jnp.dot(pooled.astype(jnp.bfloat16), w_ref[...],
                          preferred_element_type=jnp.float32)


def _round_up(x, m):
    return (x + m - 1) // m * m


def _pick_tiles(n_pad, c, hw, *, x_itemsize=2, target_bytes=4 << 20):
    """Pick (TN, TC) so the bf16 activation block is ~target_bytes."""
    # Channel tile: halve C (keeping a multiple of 8) until an 8-row block fits.
    tc = c
    while tc % 16 == 0 and 8 * tc * hw * x_itemsize > target_bytes:
        tc //= 2
    # Batch tile: multiples of 8 when possible, grown while the block fits.
    if n_pad % 8 != 0:           # only reachable for small (< 8) batches
        tn = n_pad
    else:
        tn = 8
        while (n_pad % (tn * 2) == 0
               and (tn * 2) * tc * hw * x_itemsize <= target_bytes):
            tn *= 2
    return tn, tc


def classify_forward(x_nchw, weight, bias):
    """AdaptiveAvgPool2d((1,1)) + Flatten + Linear.  (N,C,H,W) -> (N,K)."""
    N, C, H, W = x_nchw.shape
    K = weight.shape[0]
    HW = H * W

    # Batch padding: sublane-friendly multiple of 8 for large ragged batches;
    # tiny batches keep TN == N (first block dim has no (8,128) constraint,
    # and the output block then equals the full batch dim).
    Npad = N if (N % 8 == 0 or N < 8) else _round_up(N, 8)

    TN, TC = _pick_tiles(Npad, C, HW)
    Kpad = _round_up(max(K, 1), 128)

    # Class-axis tiling: keep the weight tile modest and, when there is only
    # one batch block, give the second "parallel" axis >= 2 blocks (v7x).
    TK = Kpad
    n_batch_blocks = Npad // TN
    while TK % 256 == 0 and (TC * TK * 2 > (2 << 20)
                             or (n_batch_blocks == 1 and TK > 128)):
        TK //= 2

    # NCHW-native, contiguous reshape + bf16 cast (halves HBM bytes on x).
    x3 = x_nchw.reshape(N, C, HW).astype(jnp.bfloat16)
    if Npad != N:
        x3 = jnp.pad(x3, ((0, Npad - N), (0, 0), (0, 0)))

    # Pre-transposed FC weight / bias, zero-padded to lane-dense Kpad
    # (padded logits come out as exactly 0 + 0 bias and are sliced off).
    w_t = jnp.zeros((C, Kpad), jnp.bfloat16).at[:, :K].set(
        weight.T.astype(jnp.bfloat16))
    b_pad = jnp.zeros((1, Kpad), jnp.float32).at[0, :K].set(
        bias.astype(jnp.float32))

    grid = (Npad // TN, Kpad // TK, C // TC)

    kernel = functools.partial(_classify_kernel, inv_hw=1.0 / float(HW))

    # VMEM budget from the chosen tiles (double-buffered inputs/outputs plus
    # the in-kernel f32 upcast of the activation tile), with headroom.
    vmem_need = (2 * TN * TC * HW * 2      # x blocks (bf16, double-buffered)
                 + TN * TC * HW * 4        # in-kernel f32 upcast transient
                 + 2 * TC * TK * 2         # weight blocks
                 + 2 * TK * 4              # bias blocks
                 + 2 * TN * TK * 4)        # output blocks (f32, resident)
    vmem_limit = int(min(vmem_need * 1.5 + (4 << 20), 64 * 1024 * 1024))

    flops = 2 * Npad * C * HW + 2 * Npad * C * Kpad
    bytes_accessed = (Npad * C * HW * 2 + C * Kpad * 2
                      + Kpad * 4 + Npad * Kpad * 4)

    out = pl.pallas_call(
        kernel,
        out_shape=jax.ShapeDtypeStruct((Npad, Kpad), jnp.float32),
        grid_spec=pltpu.PrefetchScalarGridSpec(
            num_scalar_prefetch=0,
            grid=grid,
            in_specs=[
                pl.BlockSpec((TN, TC, HW), lambda i, k, c: (i, c, 0)),  # x
                pl.BlockSpec((TC, TK), lambda i, k, c: (c, k)),         # w.T
                pl.BlockSpec((1, TK), lambda i, k, c: (0, k)),          # bias
            ],
            out_specs=pl.BlockSpec((TN, TK), lambda i, k, c: (i, k)),
        ),
        compiler_params=pltpu.CompilerParams(
            dimension_semantics=("parallel", "parallel", "arbitrary"),
            vmem_limit_bytes=vmem_limit),
        cost_estimate=pl.CostEstimate(
            flops=flops, transcendentals=0, bytes_accessed=bytes_accessed),
    )(x3, w_t, b_pad)

    # Slice off batch / class padding.
    return out[:N, :K]


def reference_forward(x_nchw, weight, bias):
    pooled = jnp.mean(x_nchw, axis=(2, 3))            # (N, C)
    return pooled @ weight.T + bias


if __name__ == "__main__":
    # Small shapes consistent with the module: batch=2, channels_prev=4,
    # spatial=16x16, num_classes=8.
    N, C, H, W, NUM_CLASSES = 2, 4, 16, 16, 8

    key = jax.random.PRNGKey(0)
    kx, kw, kb = jax.random.split(key, 3)

    x = jax.random.normal(kx, (N, C, H, W), dtype=jnp.float32)
    # Deterministic parameter init (uniform, roughly PyTorch Linear scale).
    bound = 1.0 / (C ** 0.5)
    weight = jax.random.uniform(kw, (NUM_CLASSES, C), jnp.float32, -bound, bound)
    bias = jax.random.uniform(kb, (NUM_CLASSES,), jnp.float32, -bound, bound)

    # The module takes a tuple (x, _) and ignores the second state.
    states = (x, jnp.zeros_like(x))

    out = classify_forward(states[0], weight, bias)
    out = jax.block_until_ready(out)

    ref = reference_forward(states[0], weight, bias)
    assert out.shape == (N, NUM_CLASSES)
    # bf16 activation/weight data path (f32 accumulation): tolerance reflects
    # bf16 rounding of x and w only.
    assert jnp.allclose(out, ref, atol=1e-2, rtol=1e-2), "mismatch vs reference"

    print("KERNEL_OK")
</pallas_src>

<mosaic_0001>
module attributes {stable_mosaic.version = 11 : i64} {
  func.func @_classify_kernel(%arg0: i32, %arg1: i32, %arg2: i32, %arg3: memref<2x4x256xbf16, #tpu.memory_space<vmem>>, %arg4: memref<4x128xbf16, #tpu.memory_space<vmem>>, %arg5: memref<1x128xf32, #tpu.memory_space<vmem>>, %arg6: memref<2x128xf32, #tpu.memory_space<vmem>>) attributes {dimension_semantics = [#tpu.dimension_semantics<parallel>, #tpu.dimension_semantics<parallel>, #tpu.dimension_semantics<arbitrary>], iteration_bounds = array<i64: 1, 1, 1>, scalar_prefetch = 0 : i64, scratch_operands = 0 : i64, tpu.core_type = #tpu.core_type<tc>, window_params = [{transform_indices = @transform_0, window_bounds = array<i64: 2, 4, 256>}, {transform_indices = @transform_1, window_bounds = array<i64: 4, 128>}, {transform_indices = @transform_2, window_bounds = array<i64: 1, 128>}, {transform_indices = @transform_3, window_bounds = array<i64: 2, 128>}]} {
    %c0_i32 = arith.constant 0 : i32
    %0 = arith.cmpi eq, %arg2, %c0_i32 : i32
    %1 = arith.extui %0 : i1 to i32
    %c0_i32_0 = arith.constant 0 : i32
    %2 = arith.cmpi ne, %1, %c0_i32_0 : i32
    scf.if %2 {
      %c0_11 = arith.constant 0 : index
      %c0_12 = arith.constant 0 : index
      %14 = vector.load %arg5[%c0_11, %c0_12] : memref<1x128xf32, #tpu.memory_space<vmem>>, vector<1x128xf32>
      %15 = vector.shape_cast %14 : vector<1x128xf32> to vector<1x128xf32>
      %16 = vector.broadcast %15 : vector<1x128xf32> to vector<2x128xf32>
      %c0_13 = arith.constant 0 : index
      %c0_14 = arith.constant 0 : index
      %17 = vector.load %arg6[%c0_13, %c0_14] : memref<2x128xf32, #tpu.memory_space<vmem>>, vector<2x128xf32>
      tpu.vector_store %arg6[%c0_13, %c0_14], %16 {strides = array<i32>} : memref<2x128xf32, #tpu.memory_space<vmem>>, vector<2x128xf32>,
    } else {
    }
    %c0 = arith.constant 0 : index
    %c0_1 = arith.constant 0 : index
    %c0_2 = arith.constant 0 : index
    %3 = vector.load %arg3[%c0, %c0_1, %c0_2] : memref<2x4x256xbf16, #tpu.memory_space<vmem>>, vector<2x4x256xbf16>
    %4 = arith.extf %3 : vector<2x4x256xbf16> to vector<2x4x256xf32>
    %cst = arith.constant dense<0.000000e+00> : vector<2x4xf32>
    %5 = vector.multi_reduction <add>, %4, %cst [2] : vector<2x4x256xf32> to vector<2x4xf32>
    %cst_3 = arith.constant 3.906250e-03 : f32
    %6 = vector.broadcast %cst_3 : f32 to vector<2x4xf32>
    %7 = arith.mulf %5, %6 : vector<2x4xf32>
    %c0_4 = arith.constant 0 : index
    %c0_5 = arith.constant 0 : index
    %8 = vector.load %arg6[%c0_4, %c0_5] : memref<2x128xf32, #tpu.memory_space<vmem>>, vector<2x128xf32>
    %9 = arith.truncf %7 : vector<2x4xf32> to vector<2x4xbf16>
    %c0_6 = arith.constant 0 : index
    %c0_7 = arith.constant 0 : index
    %10 = vector.load %arg4[%c0_6, %c0_7] : memref<4x128xbf16, #tpu.memory_space<vmem>>, vector<4x128xbf16>
    %cst_8 = arith.constant dense<0.000000e+00> : vector<2x128xf32>
    %11 = tpu.matmul %9, %10, %cst_8 {dimension_numbers = #tpu.dot_dimension_numbers<[1], [0], [0], [1], [0, 0, 1, 1], [], []>} : vector<2x4xbf16>, vector<4x128xbf16>, vector<2x128xf32> -> vector<2x128xf32>
    %12 = arith.addf %8, %11 : vector<2x128xf32>
    %c0_9 = arith.constant 0 : index
    %c0_10 = arith.constant 0 : index
    %13 = vector.load %arg6[%c0_9, %c0_10] : memref<2x128xf32, #tpu.memory_space<vmem>>, vector<2x128xf32>
    tpu.vector_store %arg6[%c0_9, %c0_10], %12 {strides = array<i32>} : memref<2x128xf32, #tpu.memory_space<vmem>>, vector<2x128xf32>,
    return
  }
  func.func @transform_0(%arg0: i32, %arg1: i32, %arg2: i32) -> (i32, i32, i32) {
    %c0_i32 = arith.constant 0 : i32
    %c0_i32_0 = arith.constant 0 : i32
    return %arg0, %arg2, %c0_i32 : i32, i32, i32
  }
  func.func @transform_1(%arg0: i32, %arg1: i32, %arg2: i32) -> (i32, i32) {
    %c0_i32 = arith.constant 0 : i32
    return %arg2, %arg1 : i32, i32
  }
  func.func @transform_2(%arg0: i32, %arg1: i32, %arg2: i32) -> (i32, i32) {
    %c0_i32 = arith.constant 0 : i32
    %c0_i32_0 = arith.constant 0 : i32
    return %c0_i32, %arg1 : i32, i32
  }
  func.func @transform_3(%arg0: i32, %arg1: i32, %arg2: i32) -> (i32, i32) {
    %c0_i32 = arith.constant 0 : i32
    return %arg0, %arg1 : i32, i32
  }
}

</mosaic_0001>

<llo_original>
// kernel: tpu_custom_call.1
$region0: #{tpu_custom_call.1}
  #allocation0 [shape = 'u32[]', space=smem, size = 0x4, offset = 0x4, fixed_abs, tag = 'smem constant byte address 0x4 - core index']
  #allocation1 [shape = 'u32[144,128]{1,0:T(1,128)}', space=vmem, size = 0x12000, scoped, tag = 'internal scratch']
  %s0 = inlined_call_operand.hbm [shape: bf16[2,4,256], index: 0, kind: input, shape index: {}]
  %s1 = inlined_call_operand.hbm [shape: bf16[4,128], index: 1, kind: input, shape index: {}]
  %s2 = inlined_call_operand.vmem [shape: f32[1,128], index: 2, kind: input, shape index: {}]
  %s3 = inlined_call_operand.hbm [shape: f32[2,128], index: 3, kind: output, shape index: {}]
  %s4 = sld [smem:[#allocation0]]
  $region34: #{tpu_custom_call.1} parent=0
    _
  %s6 = ssub.s32 1, %s4
  %s7 = scalar_select 0, %s6, %s4
  $region1: #{tpu_custom_call.1} parent=0
    #allocation2 [shape = 'u8[4096]{0}', space=vmem, size = 0x1000, scoped, tag = 'input window, operand 0, single buffered']
    #allocation3 [shape = 's32[1]{0}', space=sflag, size = 0x4, scoped, tag = 'scoped memory for tpu_custom_call.1']
    #allocation4 [shape = 's32[1]{0}', space=sflag, size = 0x4, scoped, tag = 'scoped memory for tpu_custom_call.1']
    #allocation5 [shape = 'u8[1024]{0}', space=vmem, size = 0x400, scoped, tag = 'input window, operand 1, single buffered']
    #allocation6 [shape = 's32[1]{0}', space=sflag, size = 0x4, scoped, tag = 'scoped memory for tpu_custom_call.1']
    #allocation7 [shape = 'u8[1024]{0}', space=vmem, size = 0x400, scoped, tag = 'output window, operand 0, single buffered']
    %8 = vsyncpa [#allocation3], 0
    %9 = vsyncpa [#allocation6], 0
    %10 = vsyncpa [#allocation4], 0
    // Predicated region
    $region2: #{tpu_custom_call.1} parent=1 // pred_check
      _
    $region3: #{tpu_custom_call.1} parent=1 // pred_check_branch
      %12 = sbr.rel (0) target = $region5
    $region4: #{tpu_custom_call.1} parent=1 // pred_region
      %s14 = ssub.s32 128, 128
      %15 = vsyncadd [#allocation3], %s14
      %s16 = sshll.u32 [#allocation2], 4
      %s17 = int_to_ptr.vmem [resolvable:$true] %s16
      %22 = dma.hbm_to_vmem [thread:$0]  %s0, 128, %s17, [#allocation3], 64, 64, 4
    $region5: #{tpu_custom_call.1} parent=1 // pred_fallthru
      _
    // Predicated region
    $region6: #{tpu_custom_call.1} parent=1 // pred_check
      _
    $region7: #{tpu_custom_call.1} parent=1 // pred_check_branch
      %24 = sbr.rel (0) target = $region9
    $region8: #{tpu_custom_call.1} parent=1 // pred_region
      %s26 = ssub.s32 32, 32
      %27 = vsyncadd [#allocation6], %s26
      %s29 = sshll.u32 [#allocation5], 4
      %s30 = int_to_ptr.vmem [resolvable:$true] %s29
      %32 = dma.hbm_to_vmem [thread:$0]  %s1, 32, %s30, [#allocation6]
    $region9: #{tpu_custom_call.1} parent=1 // pred_fallthru
      _
    // Predicated region
    $region10: #{tpu_custom_call.1} parent=1 // pred_check
      _
    $region11: #{tpu_custom_call.1} parent=1 // pred_check_branch
      %34 = sbr.rel (0) target = $region13
    $region12: #{tpu_custom_call.1} parent=1 // pred_region
      _
    $region13: #{tpu_custom_call.1} parent=1 // pred_fallthru
      _
    // Predicated region
    $region14: #{tpu_custom_call.1} parent=1 // pred_check
      _
    $region15: #{tpu_custom_call.1} parent=1 // pred_check_branch
      %36 = sbr.rel (0) target = $region17
    $region16: #{tpu_custom_call.1} parent=1 // pred_region
      %37 = dma.done [#allocation3], 128
    $region17: #{tpu_custom_call.1} parent=1 // pred_fallthru
      _
    // Predicated region
    $region18: #{tpu_custom_call.1} parent=1 // pred_check
      _
    $region19: #{tpu_custom_call.1} parent=1 // pred_check_branch
      %39 = sbr.rel (0) target = $region21
    $region20: #{tpu_custom_call.1} parent=1 // pred_region
      %40 = dma.done [#allocation6], 32
    $region21: #{tpu_custom_call.1} parent=1 // pred_fallthru
      _
    %p42 = scmp.eq.s32.totalorder 0, 0
    // Predicated region
    $region22: #{tpu_custom_call.1} parent=1 // pred_check
      %p43 = pneg %p42
    $region23: #{tpu_custom_call.1} parent=1 // pred_check_branch
      %45 = sbr.rel (%p43) target = $region25
    $region24: #{tpu_custom_call.1} parent=1 // pred_region
      %v46 = vld [vmem:[%s2] sm:$0x1]
      %v48 = vlaneseq
      %v49 = vshrl.u32 %v48, 7
      %v50 = vsub.s32 0, %v49
      %v51 = vrot.slane %v46, %v50
      %53 = vst [vmem:[#allocation7] sm:$0x3] %v51
    $region25: #{tpu_custom_call.1} parent=1 // pred_fallthru
      _
    %v54 = vld [vmem:[#allocation2] sm:$0xf]
    %v55 = vld [vmem:[#allocation2 + $0x4] sm:$0xf]
    %v56 = vunpack.c.l.bf16 %v54
    %v57 = vunpack.c.l.bf16 %v55
    %v60 = vcombine.high %v56, %v56
    %v61 = vcombine.high %v57, %v57
    %vm64 = vcmask 1043456
    %v65 = vsel %vm64, %v56, 0.0
    %v66 = vsel %vm64, %v60, 0.0
    %v67 = vadd.f32 %v65, %v66
    %68 = vadd.xlane.f32.xlu0 %v67
    %v69 = vpop.xlane.xlu0 %68
    %v70 = vsel %vm64, %v57, 0.0
    %v71 = vsel %vm64, %v61, 0.0
    %v72 = vadd.f32 %v70, %v71
    %73 = vadd.xlane.f32.xlu0 %v72
    %v74 = vpop.xlane.xlu0 %73
    %v75 = vmul.f32 %v69, 0.00390625
    %v76 = vmul.f32 %v74, 0.00390625
    %v77 = vld [vmem:[#allocation7] sm:$0x3]
    %v78 = vpack.c.bf16 %v75, %v75
    %v79 = vpack.c.bf16 %v76, %v76
    %v80 = vld [vmem:[#allocation5] sm:$0x3]
    %v83 = vunpack.c.l.b16 %v78
    %v84 = vunpack.c.l.b16 %v79
    %v85 = vlaneseq
    %v86 = vand.u32 %v85, 127
    %v87 = vlaneseq
    %v88 = vshrl.u32 %v87, 7
    %v89 = vsub.s32 %v86, %v88
    %v90 = vrot.slane %v83, %v89
    %v91 = vlaneseq
    %v92 = vshrl.u32 %v91, 7
    %v93 = vsub.s32 %v86, %v92
    %v94 = vrot.slane %v84, %v93
    %vm95 = vcmask 1041409
    %v96 = vsel %vm95, %v94, %v90
    %v97 = vpack.c.b16 %v96, %v96
    %vm98 = vcmask 31744
    %v100 = vsel %vm98, %v97, 0
    %vm102 = vcmask 1041408
    %v104 = vsel %vm102, %v80, 0
    %106 = vmatprep.subr.bf16.mxu0 0
    %107 = vmatpush1.bf16.msra.mxu0 0
    %108 = vmatprep.subr.bf16.mxu0 0
    %109 = vmatpush1.bf16.msra.mxu0 0
    %110 = vmatprep.subr.bf16.mxu0 0
    %111 = vmatpush1.bf16.msra.mxu0 0
    %112 = vmatprep.subr.bf16.mxu0 0
    %113 = vmatpush1.bf16.msra.mxu0 0
    %114 = vmatprep.subr.bf16.mxu0 0
    %115 = vmatpush1.bf16.msra.mxu0 0
    %116 = vmatprep.subr.bf16.mxu0 0
    %117 = vmatpush1.bf16.msra.mxu0 0
    %118 = vmatprep.subr.bf16.mxu0 0
    %119 = vmatpush1.bf16.msra.mxu0 0
    %120 = vmatprep.subr.bf16.mxu0 0
    %121 = vmatpush1.bf16.msra.mxu0 %v104
    %122 = vmatprep.subr.bf16.mxu0 0
    %123 = vmatpush2.bf16.msra.mxu0 0
    %124 = vmatprep.subr.bf16.mxu0 0
    %125 = vmatpush2.bf16.msra.mxu0 0
    %126 = vmatprep.subr.bf16.mxu0 0
    %127 = vmatpush2.bf16.msra.mxu0 0
    %128 = vmatprep.subr.bf16.mxu0 0
    %129 = vmatpush2.bf16.msra.mxu0 0
    %130 = vmatprep.subr.bf16.mxu0 0
    %131 = vmatpush2.bf16.msra.mxu0 0
    %132 = vmatprep.subr.bf16.mxu0 0
    %133 = vmatpush2.bf16.msra.mxu0 0
    %134 = vmatprep.subr.bf16.mxu0 0
    %135 = vmatpush2.bf16.msra.mxu0 0
    %136 = vmatprep.subr.bf16.mxu0 0
    %137 = vmatpush2.bf16.msra.mxu0 0
    %138 = vmatprep.mubr.bf16.mxu0 0
    %139 = vmatmul.mubr.bf16.gmra.mxu0 %v100
    %v140 = vpop.f32.mrf.mxu0
    %v141 = vadd.f32 0.0, %v140
    %v142 = vpop.f32.mrf.mxu0
    %v143 = vpop.f32.mrf.mxu0
    %v144 = vpop.f32.mrf.mxu0
    %145 = vdwg.mxu0
    %v146 = vadd.f32 %v77, %v141
    %147 = vst [vmem:[#allocation7] sm:$0x3] %v146
    // Predicated region
    $region26: #{tpu_custom_call.1} parent=1 // pred_check
      _
    $region27: #{tpu_custom_call.1} parent=1 // pred_check_branch
      %149 = sbr.rel (0) target = $region29
    $region28: #{tpu_custom_call.1} parent=1 // pred_region
      %s151 = ssub.s32 32, 32
      %152 = vsyncadd [#allocation4], %s151
      %s154 = sshll.u32 [#allocation7], 4
      %s155 = int_to_ptr.vmem [resolvable:$true] %s154
      %157 = dma.vmem_to_hbm [thread:$0]  %s155, 32, %s3, [#allocation4]
    $region29: #{tpu_custom_call.1} parent=1 // pred_fallthru
      _
    // Predicated region
    $region30: #{tpu_custom_call.1} parent=1 // pred_check
      _
    $region31: #{tpu_custom_call.1} parent=1 // pred_check_branch
      %159 = sbr.rel (0) target = $region33
    $region32: #{tpu_custom_call.1} parent=1 // pred_region
      %160 = dma.done [#allocation4], 32
    $region33: #{tpu_custom_call.1} parent=1 // pred_fallthru
      _
    %161 = vsyncpa [#allocation3], 1
    %162 = vsyncpa [#allocation6], 1
    %163 = vsyncpa [#allocation4], 1

</llo_original>
